<compile_context>
chip_gen: v6e
topology: v6e:2x2x1
jax: 0.10.0
libtpu: 0.0.40
codegen_flags: <defaults>
</compile_context>

<pallas_src>
import functools

import jax
import jax.numpy as jnp
from jax.experimental import pallas as pl
from jax.experimental.pallas import tpu as pltpu

# Module hyperparameters (the torch module references globals D_in / D_out).
D_in = 32
D_out = 16
BATCH = 8


def _round_up(n: int, m: int) -> int:
    return ((n + m - 1) // m) * m


def mlp_kernel(x_ref, w_ref, b_ref, o_ref):
    # MXU matmul in the weight dtype (bf16 fast path), f32 accumulation.
    x = x_ref[...].astype(w_ref.dtype)                          # [TM, D_in]
    acc = jnp.dot(x, w_ref[...], preferred_element_type=jnp.float32)  # [TM, D_out] f32
    # Bias add + sigmoid in f32 (v5e VPU/EUP have no bf16).
    acc = acc + b_ref[...]                                      # [1, D_out] broadcast
    o_ref[...] = jax.nn.sigmoid(acc).astype(o_ref.dtype)


def mlp_init_params(w, b, *, param_dtype=jnp.bfloat16):
    """One-time parameter prep (hoisted out of the per-call path).

    w: torch.nn.Linear layout [D_out, D_in]  ->  stored as [D_in, D_out] in
       `param_dtype` (bf16 for the production MXU path).
    b: [D_out] or [1, D_out]                 ->  stored as [1, D_out] f32.
    """
    d_out, d_in = w.shape
    w_t = jnp.asarray(w).T.astype(param_dtype)          # [D_in, D_out]
    b_2d = jnp.asarray(b).reshape(1, d_out).astype(jnp.float32)
    return w_t, b_2d


def mlp_forward(x, w_t, b_2d, *, tm=2048):
    """y = sigmoid(x @ w_t + b_2d).

    x:    [B, D_in] (f32)
    w_t:  [D_in, D_out]  (from mlp_init_params; bf16 on the fast path)
    b_2d: [1, D_out] f32 (from mlp_init_params)
    Returns [B, D_out] in x.dtype.  No wrapper-side pad/cast/slice HLOs.
    """
    B, d_in = x.shape
    d_in_w, d_out = w_t.shape
    assert d_in == d_in_w, f"x has D_in={d_in}, weight expects {d_in_w}"
    assert b_2d.shape == (1, d_out)

    # Batch tile: multiple of 8 sublanes (or equal to B), capped at tm.
    tm_eff = min(tm, _round_up(B, 8))
    if B >= 16:
        # v7x megacore: keep >= 2 batch tiles so both TensorCores get work.
        tm_eff = min(tm_eff, _round_up(pl.cdiv(B, 2), 8))
    tm_eff = max(tm_eff, 8) if B >= 8 else B

    grid = (pl.cdiv(B, tm_eff),)

    return pl.pallas_call(
        mlp_kernel,
        out_shape=jax.ShapeDtypeStruct((B, d_out), x.dtype),
        grid_spec=pl.GridSpec(
            grid=grid,
            in_specs=[
                # Activations: one batch tile per grid step (K dim unpadded,
                # legal because it equals the full array dim).
                pl.BlockSpec((tm_eff, d_in), lambda i: (i, 0)),
                # Weight / bias: constant block index -> VMEM-resident.
                pl.BlockSpec((d_in, d_out), lambda i: (0, 0)),
                pl.BlockSpec((1, d_out), lambda i: (0, 0)),
            ],
            out_specs=pl.BlockSpec((tm_eff, d_out), lambda i: (i, 0)),
        ),
        compiler_params=pltpu.CompilerParams(
            # Batch tiles are independent -> megacore shards them on v7x.
            dimension_semantics=("parallel",),
        ),
    )(x, w_t, b_2d)


if __name__ == "__main__":
    key = jax.random.PRNGKey(0)
    kx, kw, kb = jax.random.split(key, 3)

    # Deterministic synthetic parameters (torch.nn.Linear-like uniform init,
    # torch weight layout [D_out, D_in]).
    bound = 1.0 / (D_in ** 0.5)
    x = jax.random.normal(kx, (BATCH, D_in), dtype=jnp.float32)
    w = jax.random.uniform(kw, (D_out, D_in), minval=-bound, maxval=bound,
                           dtype=jnp.float32)
    b = jax.random.uniform(kb, (D_out,), minval=-bound, maxval=bound,
                           dtype=jnp.float32)

    ref = jax.nn.sigmoid(x @ w.T + b)

    # Exact-path numerics check (f32 MXU operands) -- not the shipped default.
    w_f32, b_f32 = mlp_init_params(w, b, param_dtype=jnp.float32)
    out_f32 = mlp_forward(x, w_f32, b_f32)
    jax.block_until_ready(out_f32)
    assert out_f32.shape == (BATCH, D_out)
    assert jnp.allclose(out_f32, ref, atol=1e-5, rtol=1e-5)

    # Production fast path (bf16 MXU operands, f32 accumulation / sigmoid).
    w_bf16, b_bf16 = mlp_init_params(w, b)
    out_bf16 = mlp_forward(x, w_bf16, b_bf16)
    jax.block_until_ready(out_bf16)
    assert out_bf16.shape == (BATCH, D_out)
    assert jnp.allclose(out_bf16, ref, atol=2e-2, rtol=0)

    print("KERNEL_OK")
</pallas_src>

<mosaic_0001>
module attributes {stable_mosaic.version = 11 : i64} {
  func.func @mlp_kernel(%arg0: i32, %arg1: memref<8x32xf32, #tpu.memory_space<vmem>>, %arg2: memref<32x16xf32, #tpu.memory_space<vmem>>, %arg3: memref<1x16xf32, #tpu.memory_space<vmem>>, %arg4: memref<8x16xf32, #tpu.memory_space<vmem>>) attributes {dimension_semantics = [#tpu.dimension_semantics<parallel>], iteration_bounds = array<i64: 1>, scalar_prefetch = 0 : i64, scratch_operands = 0 : i64, tpu.core_type = #tpu.core_type<tc>, window_params = [{transform_indices = @transform_0, window_bounds = array<i64: 8, 32>}, {pipeline_mode = #tpu.pipeline_mode<synchronous>, transform_indices = @transform_1, window_bounds = array<i64: 32, 16>}, {pipeline_mode = #tpu.pipeline_mode<synchronous>, transform_indices = @transform_2, window_bounds = array<i64: 1, 16>}, {transform_indices = @transform_3, window_bounds = array<i64: 8, 16>}]} {
    %c0 = arith.constant 0 : index
    %c0_0 = arith.constant 0 : index
    %0 = vector.load %arg1[%c0, %c0_0] : memref<8x32xf32, #tpu.memory_space<vmem>>, vector<8x32xf32>
    %c0_1 = arith.constant 0 : index
    %c0_2 = arith.constant 0 : index
    %1 = vector.load %arg2[%c0_1, %c0_2] : memref<32x16xf32, #tpu.memory_space<vmem>>, vector<32x16xf32>
    %cst = arith.constant dense<0.000000e+00> : vector<8x16xf32>
    %2 = tpu.matmul %0, %1, %cst {dimension_numbers = #tpu.dot_dimension_numbers<[1], [0], [0], [1], [0, 0, 1, 1], [], []>} : vector<8x32xf32>, vector<32x16xf32>, vector<8x16xf32> -> vector<8x16xf32>
    %c0_3 = arith.constant 0 : index
    %c0_4 = arith.constant 0 : index
    %3 = vector.load %arg3[%c0_3, %c0_4] : memref<1x16xf32, #tpu.memory_space<vmem>>, vector<1x16xf32>
    %4 = vector.broadcast %3 : vector<1x16xf32> to vector<8x16xf32>
    %5 = arith.addf %2, %4 : vector<8x16xf32>
    %6 = arith.negf %5 : vector<8x16xf32>
    %7 = math.exp %6 : vector<8x16xf32>
    %cst_5 = arith.constant 1.000000e+00 : f32
    %8 = vector.broadcast %cst_5 : f32 to vector<8x16xf32>
    %9 = arith.addf %8, %7 : vector<8x16xf32>
    %10 = arith.divf %8, %9 : vector<8x16xf32>
    %c0_6 = arith.constant 0 : index
    %c0_7 = arith.constant 0 : index
    %11 = vector.load %arg4[%c0_6, %c0_7] : memref<8x16xf32, #tpu.memory_space<vmem>>, vector<8x16xf32>
    tpu.vector_store %arg4[%c0_6, %c0_7], %10 {strides = array<i32>} : memref<8x16xf32, #tpu.memory_space<vmem>>, vector<8x16xf32>,
    return
  }
  func.func @transform_0(%arg0: i32) -> (i32, i32) {
    %c0_i32 = arith.constant 0 : i32
    %c0_i32_0 = arith.constant 0 : i32
    return %arg0, %c0_i32 : i32, i32
  }
  func.func @transform_1(%arg0: i32) -> (i32, i32) {
    %c0_i32 = arith.constant 0 : i32
    %c0_i32_0 = arith.constant 0 : i32
    %c0_i32_1 = arith.constant 0 : i32
    return %c0_i32, %c0_i32_0 : i32, i32
  }
  func.func @transform_2(%arg0: i32) -> (i32, i32) {
    %c0_i32 = arith.constant 0 : i32
    %c0_i32_0 = arith.constant 0 : i32
    %c0_i32_1 = arith.constant 0 : i32
    return %c0_i32, %c0_i32_0 : i32, i32
  }
  func.func @transform_3(%arg0: i32) -> (i32, i32) {
    %c0_i32 = arith.constant 0 : i32
    %c0_i32_0 = arith.constant 0 : i32
    return %arg0, %c0_i32 : i32, i32
  }
}

</mosaic_0001>

<llo_original>
// kernel: tpu_custom_call.1
$region0: #{tpu_custom_call.1}
  #allocation0 [shape = 'u32[]', space=smem, size = 0x4, offset = 0x4, fixed_abs, tag = 'smem constant byte address 0x4 - core index']
  #allocation1 [shape = 'u32[144,128]{1,0:T(1,128)}', space=vmem, size = 0x12000, scoped, tag = 'internal scratch']
  %s0 = inlined_call_operand.vmem [shape: f32[8,32], index: 0, kind: input, shape index: {}]
  %s1 = inlined_call_operand.vmem [shape: f32[32,16], index: 1, kind: input, shape index: {}]
  %s2 = inlined_call_operand.vmem [shape: f32[1,16], index: 2, kind: input, shape index: {}]
  %s3 = inlined_call_operand.hbm [shape: f32[8,16], index: 3, kind: output, shape index: {}]
  %s4 = sld [smem:[#allocation0]]
  $region22: #{tpu_custom_call.1} parent=0
    _
  %s6 = ssub.s32 1, %s4
  %s7 = scalar_select 0, %s6, %s4
  $region1: #{tpu_custom_call.1} parent=0
    #allocation2 [shape = 'u8[4096]{0}', space=vmem, size = 0x1000, scoped, tag = 'output window, operand 0, single buffered']
    #allocation3 [shape = 's32[1]{0}', space=sflag, size = 0x4, scoped, tag = 'scoped memory for tpu_custom_call.1']
    %8 = vsyncpa [#allocation3], 0
    // Predicated region
    $region2: #{tpu_custom_call.1} parent=1 // pred_check
      _
    $region3: #{tpu_custom_call.1} parent=1 // pred_check_branch
      %10 = sbr.rel (0) target = $region5
    $region4: #{tpu_custom_call.1} parent=1 // pred_region
      _
    $region5: #{tpu_custom_call.1} parent=1 // pred_fallthru
      _
    // Predicated region
    $region6: #{tpu_custom_call.1} parent=1 // pred_check
      _
    $region7: #{tpu_custom_call.1} parent=1 // pred_check_branch
      %12 = sbr.rel (0) target = $region9
    $region8: #{tpu_custom_call.1} parent=1 // pred_region
      _
    $region9: #{tpu_custom_call.1} parent=1 // pred_fallthru
      _
    // Predicated region
    $region10: #{tpu_custom_call.1} parent=1 // pred_check
      _
    $region11: #{tpu_custom_call.1} parent=1 // pred_check_branch
      %14 = sbr.rel (0) target = $region13
    $region12: #{tpu_custom_call.1} parent=1 // pred_region
      _
    $region13: #{tpu_custom_call.1} parent=1 // pred_fallthru
      _
    %v15 = vld [vmem:[%s0] sm:$0xff]
    %v16 = vld [vmem:[%s1] sm:$0xff]
    %v17 = vld [vmem:[%s1 + $0x8] sm:$0xff]
    %v18 = vld [vmem:[%s1 + $0x10] sm:$0xff]
    %v19 = vld [vmem:[%s1 + $0x18] sm:$0xff]
    %v20 = vld [vmem:[%s2] sm:$0x1]
    %v22 = vlaneseq
    %v23 = vshrl.u32 %v22, 7
    %v24 = vsub.s32 0, %v23
    %v25 = vrot.slane %v20, %v24
    %vm27 = vcmask 261120
    %v29 = vsel %vm27, %v15, 0
    %31 = vmatprep.subr.mxu0 0.0
    %32 = vmatpush1.msra.mxu0 0.0
    %33 = vmatprep.subr.mxu0 0.0
    %34 = vmatpush1.msra.mxu0 0.0
    %35 = vmatprep.subr.mxu0 0.0
    %36 = vmatpush1.msra.mxu0 0.0
    %37 = vmatprep.subr.mxu0 0.0
    %38 = vmatpush1.msra.mxu0 0.0
    %39 = vmatprep.subr.mxu0 0.0
    %40 = vmatpush1.msra.mxu0 0.0
    %41 = vmatprep.subr.mxu0 0.0
    %42 = vmatpush1.msra.mxu0 0.0
    %43 = vmatprep.subr.mxu0 0.0
    %44 = vmatpush1.msra.mxu0 0.0
    %45 = vmatprep.subr.mxu0 0.0
    %46 = vmatpush1.msra.mxu0 0.0
    %47 = vmatprep.subr.mxu0 0.0
    %48 = vmatpush1.msra.mxu0 0.0
    %49 = vmatprep.subr.mxu0 0.0
    %50 = vmatpush1.msra.mxu0 0.0
    %51 = vmatprep.subr.mxu0 0.0
    %52 = vmatpush1.msra.mxu0 0.0
    %53 = vmatprep.subr.mxu0 0.0
    %54 = vmatpush1.msra.mxu0 0.0
    %55 = vmatprep.subr.mxu0 0.0
    %56 = vmatpush1.msra.mxu0 %v19
    %57 = vmatprep.subr.mxu0 0.0
    %58 = vmatpush1.msra.mxu0 %v18
    %59 = vmatprep.subr.mxu0 0.0
    %60 = vmatpush1.msra.mxu0 %v17
    %61 = vmatprep.subr.mxu0 0.0
    %62 = vmatpush1.msra.mxu0 %v16
    %63 = vmatprep.subr.mxu0 0.0
    %64 = vmatpush2.msra.mxu0 0.0
    %65 = vmatprep.subr.mxu0 0.0
    %66 = vmatpush2.msra.mxu0 0.0
    %67 = vmatprep.subr.mxu0 0.0
    %68 = vmatpush2.msra.mxu0 0.0
    %69 = vmatprep.subr.mxu0 0.0
    %70 = vmatpush2.msra.mxu0 0.0
    %71 = vmatprep.subr.mxu0 0.0
    %72 = vmatpush2.msra.mxu0 0.0
    %73 = vmatprep.subr.mxu0 0.0
    %74 = vmatpush2.msra.mxu0 0.0
    %75 = vmatprep.subr.mxu0 0.0
    %76 = vmatpush2.msra.mxu0 0.0
    %77 = vmatprep.subr.mxu0 0.0
    %78 = vmatpush2.msra.mxu0 0.0
    %79 = vmatprep.subr.mxu0 0.0
    %80 = vmatpush2.msra.mxu0 0.0
    %81 = vmatprep.subr.mxu0 0.0
    %82 = vmatpush2.msra.mxu0 0.0
    %83 = vmatprep.subr.mxu0 0.0
    %84 = vmatpush2.msra.mxu0 0.0
    %85 = vmatprep.subr.mxu0 0.0
    %86 = vmatpush2.msra.mxu0 0.0
    %87 = vmatprep.subr.mxu0 0.0
    %88 = vmatpush2.msra.mxu0 0.0
    %89 = vmatprep.subr.mxu0 0.0
    %90 = vmatpush2.msra.mxu0 0.0
    %91 = vmatprep.subr.mxu0 0.0
    %92 = vmatpush2.msra.mxu0 0.0
    %93 = vmatprep.subr.mxu0 0.0
    %94 = vmatpush2.msra.mxu0 0.0
    %95 = vmatprep.mubr.f32.mxu0 0.0
    %96 = vmatmul.mubr.f32.gmra.mxu0 %v29
    %v97 = vpop.f32.mrf.mxu0
    %v98 = vadd.f32 %v25, %v97
    %v99 = vpop.f32.mrf.mxu0
    %100 = vdwg.mxu0
    %v101 = vxor.u32 %v98, 2147483648
    %v102 = vmul.f32 %v101, 1.442695
    %v103 = vpow.pop %v102
    %v104 = vadd.f32 %v103, 1.0
    %v105 = vrcp.pop %v104
    %v106 = vmul.f32 1.0, %v105
    %vm107 = vcmask 130048
    %108 = vst.msk [vmem:[#allocation2] sm:$0xff] %vm107, %v106
    // Predicated region
    $region14: #{tpu_custom_call.1} parent=1 // pred_check
      _
    $region15: #{tpu_custom_call.1} parent=1 // pred_check_branch
      %110 = sbr.rel (0) target = $region17
    $region16: #{tpu_custom_call.1} parent=1 // pred_region
      %s112 = ssub.s32 128, 128
      %113 = vsyncadd [#allocation3], %s112
      %s115 = sshll.u32 [#allocation2], 4
      %s116 = int_to_ptr.vmem [resolvable:$true] %s115
      %118 = dma.vmem_to_hbm [thread:$0]  %s116, 128, %s3, [#allocation3]
    $region17: #{tpu_custom_call.1} parent=1 // pred_fallthru
      _
    // Predicated region
    $region18: #{tpu_custom_call.1} parent=1 // pred_check
      _
    $region19: #{tpu_custom_call.1} parent=1 // pred_check_branch
      %120 = sbr.rel (0) target = $region21
    $region20: #{tpu_custom_call.1} parent=1 // pred_region
      %121 = dma.done [#allocation3], 128
    $region21: #{tpu_custom_call.1} parent=1 // pred_fallthru
      _
    %122 = vsyncpa [#allocation3], 1

</llo_original>
